<compile_context>
chip_gen: v7x
topology: tpu7x:2x2x1
jax: 0.10.0
libtpu: 0.0.40
codegen_flags: <defaults>
</compile_context>

<pallas_src>
import functools

import jax
import jax.numpy as jnp
from jax.experimental import pallas as pl
from jax.experimental.pallas import tpu as pltpu


def _round_up(x, m):
    return ((x + m - 1) // m) * m


def _sublane_multiple(dtype):
    itemsize = jnp.dtype(dtype).itemsize
    if itemsize >= 4:
        return 8
    if itemsize == 2:
        return 16
    return 32


def _mf_fused_kernel(u_idx_ref, q_idx_ref, u_tab_ref, q_tab_ref,
                     res_ref, uf_ref, qf_ref, ub_ref, qb_ref, *, nfactors):
    tb = u_idx_ref.shape[0]
    n_u = u_tab_ref.shape[0]
    n_q = q_tab_ref.shape[0]
    F = nfactors

    u_idx = u_idx_ref[...]            # (tb, 1) int32
    q_idx = q_idx_ref[...]            # (tb, 1) int32

    # Fused gather: one-hot(idx) @ VMEM-resident table on the MXU.
    oh_u = (jax.lax.broadcasted_iota(jnp.int32, (tb, n_u), 1) == u_idx).astype(jnp.float32)
    oh_q = (jax.lax.broadcasted_iota(jnp.int32, (tb, n_q), 1) == q_idx).astype(jnp.float32)

    gu = jnp.dot(oh_u, u_tab_ref[...].astype(jnp.float32),
                 preferred_element_type=jnp.float32)      # (tb, Fpad) f32
    gq = jnp.dot(oh_q, q_tab_ref[...].astype(jnp.float32),
                 preferred_element_type=jnp.float32)      # (tb, Fpad) f32

    # Augmented-row dot: cols [0:F) factors, col F = user bias / 1, col F+1 = 1 / q bias,
    # remaining cols are zero padding -> sum(gu*gq) = sum(uf*qf) + ub + qb.
    logits = jnp.sum(gu * gq, axis=1, keepdims=True)      # (tb, 1) f32
    res_ref[...] = jax.nn.sigmoid(logits).astype(res_ref.dtype)

    # Residual outputs (written once, never re-read).
    uf_ref[...] = gu[:, :F].astype(uf_ref.dtype)
    qf_ref[...] = gq[:, :F].astype(qf_ref.dtype)
    ub_ref[...] = gu[:, F:F + 1].astype(ub_ref.dtype)
    qb_ref[...] = gq[:, F + 1:F + 2].astype(qb_ref.dtype)


def _augment_tables(params):
    """Append bias + ones columns and pad to TPU-friendly shapes."""
    uf = params["user_factors"]
    qf = params["question_factors"]
    ub = params["user_biases"]
    qb = params["question_biases"]
    n_u, F = uf.shape
    n_q, _ = qf.shape
    dtype = uf.dtype

    u_aug = jnp.concatenate([uf, ub.astype(dtype), jnp.ones((n_u, 1), dtype)], axis=1)
    q_aug = jnp.concatenate([qf, jnp.ones((n_q, 1), dtype), qb.astype(dtype)], axis=1)

    sub = _sublane_multiple(dtype)
    f_pad = _round_up(F + 2, 128)               # lane-align the augmented factor axis
    n_u_pad = _round_up(n_u, sub)
    n_q_pad = _round_up(n_q, sub)
    u_aug = jnp.pad(u_aug, ((0, n_u_pad - n_u), (0, f_pad - (F + 2))))
    q_aug = jnp.pad(q_aug, ((0, n_q_pad - n_q), (0, f_pad - (F + 2))))
    return u_aug, q_aug


def mf_interaction_fused(u_aug, q_aug, user_idx, question_idx, *, nfactors,
                         param_dtype, tile_b=512, vmem_limit_bytes=None):
    n_u_pad, f_pad = u_aug.shape
    n_q_pad, _ = q_aug.shape
    B = user_idx.shape[0]
    F = nfactors

    # Explicit, bounded tile size; handle ragged batch by padding (row 0 is always valid).
    sub = _sublane_multiple(param_dtype)
    tile_b = max(sub, min(int(tile_b), _round_up(B, sub)))
    tile_b = _round_up(tile_b, sub)
    Bp = _round_up(B, tile_b)

    def pad_idx(idx):
        idx = idx.astype(jnp.int32)
        if Bp != B:
            idx = jnp.pad(idx, (0, Bp - B))
        return idx.reshape(Bp, 1)

    u_idx = pad_idx(user_idx)
    q_idx = pad_idx(question_idx)

    grid = (Bp // tile_b,)

    out_shape = (
        jax.ShapeDtypeStruct((Bp, 1), param_dtype),   # result
        jax.ShapeDtypeStruct((Bp, F), param_dtype),   # uf
        jax.ShapeDtypeStruct((Bp, F), param_dtype),   # qf
        jax.ShapeDtypeStruct((Bp, 1), param_dtype),   # ub
        jax.ShapeDtypeStruct((Bp, 1), param_dtype),   # qb
    )
    out_specs = (
        pl.BlockSpec((tile_b, 1), lambda i: (i, 0)),
        pl.BlockSpec((tile_b, F), lambda i: (i, 0)),
        pl.BlockSpec((tile_b, F), lambda i: (i, 0)),
        pl.BlockSpec((tile_b, 1), lambda i: (i, 0)),
        pl.BlockSpec((tile_b, 1), lambda i: (i, 0)),
    )
    in_specs = [
        pl.BlockSpec((tile_b, 1), lambda i: (i, 0)),          # user indices (streamed)
        pl.BlockSpec((tile_b, 1), lambda i: (i, 0)),          # question indices (streamed)
        pl.BlockSpec((n_u_pad, f_pad), lambda i: (0, 0)),     # user table (VMEM-resident)
        pl.BlockSpec((n_q_pad, f_pad), lambda i: (0, 0)),     # question table (VMEM-resident)
    ]

    kernel = functools.partial(_mf_fused_kernel, nfactors=F)

    outs = pl.pallas_call(
        kernel,
        out_shape=out_shape,
        grid_spec=pltpu.PrefetchScalarGridSpec(
            num_scalar_prefetch=0,
            grid=grid,
            in_specs=in_specs,
            out_specs=out_specs,
        ),
        compiler_params=pltpu.CompilerParams(
            dimension_semantics=("parallel",),      # batch tiles shard across TCs (v7x)
            vmem_limit_bytes=vmem_limit_bytes,      # raise together with tile_b if needed
        ),
    )(u_idx, q_idx, u_aug, q_aug)

    if Bp != B:
        outs = tuple(o[:B] for o in outs)
    return outs


def init_params(key, n_questions, n_users, n_factors, dtype=jnp.float32):
    """torch.nn.Embedding default init is N(0, 1)."""
    k1, k2, k3, k4 = jax.random.split(key, 4)
    return {
        "user_factors": jax.random.normal(k1, (n_users, n_factors)).astype(dtype),
        "question_factors": jax.random.normal(k2, (n_questions, n_factors)).astype(dtype),
        "user_biases": jax.random.normal(k3, (n_users, 1)).astype(dtype),
        "question_biases": jax.random.normal(k4, (n_questions, 1)).astype(dtype),
    }


def basic_mf_forward(params, question, user, *, tile_b=512, vmem_limit_bytes=None):
    nfactors = params["user_factors"].shape[1]
    dtype = params["user_factors"].dtype
    u_aug, q_aug = _augment_tables(params)
    return mf_interaction_fused(
        u_aug, q_aug, user, question,
        nfactors=nfactors, param_dtype=dtype,
        tile_b=tile_b, vmem_limit_bytes=vmem_limit_bytes)


if __name__ == "__main__":
    n_questions, n_users, n_factors = 64, 48, 32
    batch = 8

    key = jax.random.PRNGKey(0)
    pkey, qkey, ukey = jax.random.split(key, 3)
    params = init_params(pkey, n_questions, n_users, n_factors, dtype=jnp.float32)

    question = jax.random.randint(qkey, (batch,), 0, n_questions, dtype=jnp.int32)
    user = jax.random.randint(ukey, (batch,), 0, n_users, dtype=jnp.int32)

    result, uf, qf, ub, qb = basic_mf_forward(params, question, user)
    jax.block_until_ready((result, uf, qf, ub, qb))

    # Pure-JAX reference.
    uf_ref = jnp.take(params["user_factors"], user, axis=0)
    qf_ref = jnp.take(params["question_factors"], question, axis=0)
    ub_ref = jnp.take(params["user_biases"], user, axis=0)
    qb_ref = jnp.take(params["question_biases"], question, axis=0)
    res_ref = jax.nn.sigmoid(jnp.sum(uf_ref * qf_ref, axis=1, keepdims=True) + ub_ref + qb_ref)

    assert result.shape == (batch, 1)
    assert jnp.allclose(result, res_ref, atol=1e-5), "result mismatch vs reference"
    assert jnp.allclose(uf, uf_ref, atol=1e-6), "uf mismatch"
    assert jnp.allclose(qf, qf_ref, atol=1e-6), "qf mismatch"
    assert jnp.allclose(ub, ub_ref, atol=1e-6), "ub mismatch"
    assert jnp.allclose(qb, qb_ref, atol=1e-6), "qb mismatch"

    # bf16-storage smoke test (feedback: bf16 tables halve the dominant HBM traffic;
    # compute stays f32 inside the kernel, so this is also v5e-safe).
    params_bf16 = jax.tree_util.tree_map(lambda p: p.astype(jnp.bfloat16), params)
    r16, uf16, qf16, ub16, qb16 = basic_mf_forward(params_bf16, question, user)
    jax.block_until_ready((r16, uf16, qf16, ub16, qb16))
    to_f32 = lambda x: x.astype(jnp.bfloat16).astype(jnp.float32)
    ref16 = jax.nn.sigmoid(
        jnp.sum(to_f32(uf_ref) * to_f32(qf_ref), axis=1, keepdims=True)
        + to_f32(ub_ref) + to_f32(qb_ref))
    assert r16.shape == (batch, 1)
    assert jnp.allclose(r16.astype(jnp.float32), ref16, atol=2e-2), "bf16 result mismatch"

    print("KERNEL_OK")
</pallas_src>

<mosaic_0001>
module attributes {stable_mosaic.version = 11 : i64} {
  func.func @_mf_fused_kernel(%arg0: i32, %arg1: memref<8x1xi32, #tpu.memory_space<vmem>>, %arg2: memref<8x1xi32, #tpu.memory_space<vmem>>, %arg3: memref<48x128xf32, #tpu.memory_space<vmem>>, %arg4: memref<64x128xf32, #tpu.memory_space<vmem>>, %arg5: memref<8x1xf32, #tpu.memory_space<vmem>>, %arg6: memref<8x32xf32, #tpu.memory_space<vmem>>, %arg7: memref<8x32xf32, #tpu.memory_space<vmem>>, %arg8: memref<8x1xf32, #tpu.memory_space<vmem>>, %arg9: memref<8x1xf32, #tpu.memory_space<vmem>>) attributes {dimension_semantics = [#tpu.dimension_semantics<parallel>], iteration_bounds = array<i64: 1>, scalar_prefetch = 0 : i64, scratch_operands = 0 : i64, tpu.core_type = #tpu.core_type<tc>, window_params = [{transform_indices = @transform_0, window_bounds = array<i64: 8, 1>}, {transform_indices = @transform_1, window_bounds = array<i64: 8, 1>}, {pipeline_mode = #tpu.pipeline_mode<synchronous>, transform_indices = @transform_2, window_bounds = array<i64: 48, 128>}, {pipeline_mode = #tpu.pipeline_mode<synchronous>, transform_indices = @transform_3, window_bounds = array<i64: 64, 128>}, {transform_indices = @transform_4, window_bounds = array<i64: 8, 1>}, {transform_indices = @transform_5, window_bounds = array<i64: 8, 32>}, {transform_indices = @transform_6, window_bounds = array<i64: 8, 32>}, {transform_indices = @transform_7, window_bounds = array<i64: 8, 1>}, {transform_indices = @transform_8, window_bounds = array<i64: 8, 1>}]} {
    %c0 = arith.constant 0 : index
    %c0_0 = arith.constant 0 : index
    %0 = vector.load %arg1[%c0, %c0_0] : memref<8x1xi32, #tpu.memory_space<vmem>>, vector<8x1xi32>
    %c0_1 = arith.constant 0 : index
    %c0_2 = arith.constant 0 : index
    %1 = vector.load %arg2[%c0_1, %c0_2] : memref<8x1xi32, #tpu.memory_space<vmem>>, vector<8x1xi32>
    %2 = tpu.iota {dimensions = array<i32: 1>} : vector<8x48xi32>
    %3 = vector.broadcast %0 : vector<8x1xi32> to vector<8x48xi32>
    %4 = arith.cmpi eq, %2, %3 : vector<8x48xi32>
    %5 = arith.extui %4 : vector<8x48xi1> to vector<8x48xi32>
    %6 = arith.sitofp %5 : vector<8x48xi32> to vector<8x48xf32>
    %7 = tpu.iota {dimensions = array<i32: 1>} : vector<8x64xi32>
    %8 = vector.broadcast %1 : vector<8x1xi32> to vector<8x64xi32>
    %9 = arith.cmpi eq, %7, %8 : vector<8x64xi32>
    %10 = arith.extui %9 : vector<8x64xi1> to vector<8x64xi32>
    %11 = arith.sitofp %10 : vector<8x64xi32> to vector<8x64xf32>
    %c0_3 = arith.constant 0 : index
    %c0_4 = arith.constant 0 : index
    %12 = vector.load %arg3[%c0_3, %c0_4] : memref<48x128xf32, #tpu.memory_space<vmem>>, vector<48x128xf32>
    %cst = arith.constant dense<0.000000e+00> : vector<8x128xf32>
    %13 = tpu.matmul %6, %12, %cst {dimension_numbers = #tpu.dot_dimension_numbers<[1], [0], [0], [1], [0, 0, 1, 1], [], []>} : vector<8x48xf32>, vector<48x128xf32>, vector<8x128xf32> -> vector<8x128xf32>
    %c0_5 = arith.constant 0 : index
    %c0_6 = arith.constant 0 : index
    %14 = vector.load %arg4[%c0_5, %c0_6] : memref<64x128xf32, #tpu.memory_space<vmem>>, vector<64x128xf32>
    %cst_7 = arith.constant dense<0.000000e+00> : vector<8x128xf32>
    %15 = tpu.matmul %11, %14, %cst_7 {dimension_numbers = #tpu.dot_dimension_numbers<[1], [0], [0], [1], [0, 0, 1, 1], [], []>} : vector<8x64xf32>, vector<64x128xf32>, vector<8x128xf32> -> vector<8x128xf32>
    %16 = arith.mulf %13, %15 : vector<8x128xf32>
    %cst_8 = arith.constant dense<0.000000e+00> : vector<8xf32>
    %17 = vector.multi_reduction <add>, %16, %cst_8 [1] : vector<8x128xf32> to vector<8xf32>
    %18 = vector.shape_cast %17 : vector<8xf32> to vector<8x1xf32>
    %19 = arith.negf %18 : vector<8x1xf32>
    %20 = math.exp %19 : vector<8x1xf32>
    %cst_9 = arith.constant 1.000000e+00 : f32
    %21 = vector.broadcast %cst_9 : f32 to vector<8x1xf32>
    %22 = arith.addf %21, %20 : vector<8x1xf32>
    %23 = arith.divf %21, %22 : vector<8x1xf32>
    %c0_10 = arith.constant 0 : index
    %c0_11 = arith.constant 0 : index
    %24 = vector.load %arg5[%c0_10, %c0_11] : memref<8x1xf32, #tpu.memory_space<vmem>>, vector<8x1xf32>
    tpu.vector_store %arg5[%c0_10, %c0_11], %23 {strides = array<i32>} : memref<8x1xf32, #tpu.memory_space<vmem>>, vector<8x1xf32>,
    %25 = vector.extract_strided_slice %13 {offsets = [0, 0], sizes = [8, 32], strides = [1, 1]} : vector<8x128xf32> to vector<8x32xf32>
    %c0_12 = arith.constant 0 : index
    %c0_13 = arith.constant 0 : index
    %26 = vector.load %arg6[%c0_12, %c0_13] : memref<8x32xf32, #tpu.memory_space<vmem>>, vector<8x32xf32>
    tpu.vector_store %arg6[%c0_12, %c0_13], %25 {strides = array<i32>} : memref<8x32xf32, #tpu.memory_space<vmem>>, vector<8x32xf32>,
    %27 = vector.extract_strided_slice %15 {offsets = [0, 0], sizes = [8, 32], strides = [1, 1]} : vector<8x128xf32> to vector<8x32xf32>
    %c0_14 = arith.constant 0 : index
    %c0_15 = arith.constant 0 : index
    %28 = vector.load %arg7[%c0_14, %c0_15] : memref<8x32xf32, #tpu.memory_space<vmem>>, vector<8x32xf32>
    tpu.vector_store %arg7[%c0_14, %c0_15], %27 {strides = array<i32>} : memref<8x32xf32, #tpu.memory_space<vmem>>, vector<8x32xf32>,
    %29 = vector.extract_strided_slice %13 {offsets = [0, 32], sizes = [8, 1], strides = [1, 1]} : vector<8x128xf32> to vector<8x1xf32>
    %c0_16 = arith.constant 0 : index
    %c0_17 = arith.constant 0 : index
    %30 = vector.load %arg8[%c0_16, %c0_17] : memref<8x1xf32, #tpu.memory_space<vmem>>, vector<8x1xf32>
    tpu.vector_store %arg8[%c0_16, %c0_17], %29 {strides = array<i32>} : memref<8x1xf32, #tpu.memory_space<vmem>>, vector<8x1xf32>,
    %31 = vector.extract_strided_slice %15 {offsets = [0, 33], sizes = [8, 1], strides = [1, 1]} : vector<8x128xf32> to vector<8x1xf32>
    %c0_18 = arith.constant 0 : index
    %c0_19 = arith.constant 0 : index
    %32 = vector.load %arg9[%c0_18, %c0_19] : memref<8x1xf32, #tpu.memory_space<vmem>>, vector<8x1xf32>
    tpu.vector_store %arg9[%c0_18, %c0_19], %31 {strides = array<i32>} : memref<8x1xf32, #tpu.memory_space<vmem>>, vector<8x1xf32>,
    return
  }
  func.func @transform_0(%arg0: i32) -> (i32, i32) {
    %c0_i32 = arith.constant 0 : i32
    %c0_i32_0 = arith.constant 0 : i32
    return %arg0, %c0_i32 : i32, i32
  }
  func.func @transform_1(%arg0: i32) -> (i32, i32) {
    %c0_i32 = arith.constant 0 : i32
    %c0_i32_0 = arith.constant 0 : i32
    return %arg0, %c0_i32 : i32, i32
  }
  func.func @transform_2(%arg0: i32) -> (i32, i32) {
    %c0_i32 = arith.constant 0 : i32
    %c0_i32_0 = arith.constant 0 : i32
    %c0_i32_1 = arith.constant 0 : i32
    return %c0_i32, %c0_i32_0 : i32, i32
  }
  func.func @transform_3(%arg0: i32) -> (i32, i32) {
    %c0_i32 = arith.constant 0 : i32
    %c0_i32_0 = arith.constant 0 : i32
    %c0_i32_1 = arith.constant 0 : i32
    return %c0_i32, %c0_i32_0 : i32, i32
  }
  func.func @transform_4(%arg0: i32) -> (i32, i32) {
    %c0_i32 = arith.constant 0 : i32
    %c0_i32_0 = arith.constant 0 : i32
    return %arg0, %c0_i32 : i32, i32
  }
  func.func @transform_5(%arg0: i32) -> (i32, i32) {
    %c0_i32 = arith.constant 0 : i32
    %c0_i32_0 = arith.constant 0 : i32
    return %arg0, %c0_i32 : i32, i32
  }
  func.func @transform_6(%arg0: i32) -> (i32, i32) {
    %c0_i32 = arith.constant 0 : i32
    %c0_i32_0 = arith.constant 0 : i32
    return %arg0, %c0_i32 : i32, i32
  }
  func.func @transform_7(%arg0: i32) -> (i32, i32) {
    %c0_i32 = arith.constant 0 : i32
    %c0_i32_0 = arith.constant 0 : i32
    return %arg0, %c0_i32 : i32, i32
  }
  func.func @transform_8(%arg0: i32) -> (i32, i32) {
    %c0_i32 = arith.constant 0 : i32
    %c0_i32_0 = arith.constant 0 : i32
    return %arg0, %c0_i32 : i32, i32
  }
}

</mosaic_0001>

<llo_original>
// kernel: tpu_custom_call.1
$region0: #{tpu_custom_call.1}
  #allocation0 [shape = 'u32[]', space=smem, size = 0x4, offset = 0x4, fixed_abs, tag = 'smem constant byte address 0x4 - core index']
  #allocation1 [shape = 'u32[144,128]{1,0:T(1,128)}', space=vmem, size = 0x12000, scoped, tag = 'internal scratch']
  %s0 = inlined_call_operand.vmem [shape: s32[8,1], index: 0, kind: input, shape index: {}]
  %s1 = inlined_call_operand.vmem [shape: s32[8,1], index: 1, kind: input, shape index: {}]
  %s2 = inlined_call_operand.hbm [shape: f32[48,128], index: 2, kind: input, shape index: {}]
  %s3 = inlined_call_operand.hbm [shape: f32[64,128], index: 3, kind: input, shape index: {}]
  %s4 = inlined_call_operand.vmem [shape: f32[8,1], index: 4, kind: output, shape index: {0}]
  %s5 = inlined_call_operand.hbm [shape: f32[8,32], index: 5, kind: output, shape index: {1}]
  %s6 = inlined_call_operand.hbm [shape: f32[8,32], index: 6, kind: output, shape index: {2}]
  %s7 = inlined_call_operand.vmem [shape: f32[8,1], index: 7, kind: output, shape index: {3}]
  %s8 = inlined_call_operand.vmem [shape: f32[8,1], index: 8, kind: output, shape index: {4}]
  %9 = xla_tuple %s4, %s5, %s6, %s7, %s8
  %s10 = sld [smem:[#allocation0]]
  $region66: #{tpu_custom_call.1} parent=0
    _
  %s12 = ssub.s32 1, %s10
  %s13 = scalar_select 0, %s12, %s10
  $region1: #{tpu_custom_call.1} parent=0
    #allocation2 [shape = 'u8[24576]{0}', space=vmem, size = 0x6000, scoped, tag = 'input window, operand 2, single buffered']
    #allocation3 [shape = 's32[1]{0}', space=sflag, size = 0x4, scoped, tag = 'scoped memory for tpu_custom_call.1']
    #allocation4 [shape = 's32[1]{0}', space=sflag, size = 0x4, scoped, tag = 'scoped memory for tpu_custom_call.1']
    #allocation5 [shape = 'u8[32768]{0}', space=vmem, size = 0x8000, scoped, tag = 'input window, operand 3, single buffered']
    #allocation6 [shape = 's32[1]{0}', space=sflag, size = 0x4, scoped, tag = 'scoped memory for tpu_custom_call.1']
    #allocation7 [shape = 'u8[4096]{0}', space=vmem, size = 0x1000, scoped, tag = 'output window, operand 1, single buffered']
    #allocation8 [shape = 'u8[4096]{0}', space=vmem, size = 0x1000, scoped, tag = 'output window, operand 2, single buffered']
    #allocation9 [shape = 's32[1]{0}', space=sflag, size = 0x4, scoped, tag = 'scoped memory for tpu_custom_call.1']
    %14 = vsyncpa [#allocation3], 0
    %15 = vsyncpa [#allocation6], 0
    %16 = vsyncpa [#allocation4], 0
    %17 = vsyncpa [#allocation9], 0
    // Predicated region
    $region2: #{tpu_custom_call.1} parent=1 // pred_check
      _
    $region3: #{tpu_custom_call.1} parent=1 // pred_check_branch
      %19 = sbr.rel (0) target = $region5
    $region4: #{tpu_custom_call.1} parent=1 // pred_region
      _
    $region5: #{tpu_custom_call.1} parent=1 // pred_fallthru
      _
    // Predicated region
    $region6: #{tpu_custom_call.1} parent=1 // pred_check
      _
    $region7: #{tpu_custom_call.1} parent=1 // pred_check_branch
      %21 = sbr.rel (0) target = $region9
    $region8: #{tpu_custom_call.1} parent=1 // pred_region
      _
    $region9: #{tpu_custom_call.1} parent=1 // pred_fallthru
      _
    // Predicated region
    $region10: #{tpu_custom_call.1} parent=1 // pred_check
      _
    $region11: #{tpu_custom_call.1} parent=1 // pred_check_branch
      %23 = sbr.rel (0) target = $region13
    $region12: #{tpu_custom_call.1} parent=1 // pred_region
      %s25 = ssub.s32 768, 768
      %26 = vsyncadd [#allocation3], %s25
      %s27 = sshll.u32 [#allocation2], 4
      %s28 = int_to_ptr.vmem [resolvable:$true] %s27
      %33 = dma.hbm_to_vmem [thread:$0]  %s2, 768, %s28, [#allocation3], 128, 128, 8
    $region13: #{tpu_custom_call.1} parent=1 // pred_fallthru
      _
    // Predicated region
    $region14: #{tpu_custom_call.1} parent=1 // pred_check
      _
    $region15: #{tpu_custom_call.1} parent=1 // pred_check_branch
      %35 = sbr.rel (0) target = $region17
    $region16: #{tpu_custom_call.1} parent=1 // pred_region
      %s37 = ssub.s32 1024, 1024
      %38 = vsyncadd [#allocation6], %s37
      %s39 = sshll.u32 [#allocation5], 4
      %s40 = int_to_ptr.vmem [resolvable:$true] %s39
      %45 = dma.hbm_to_vmem [thread:$0]  %s3, 1024, %s40, [#allocation6], 128, 128, 8
    $region17: #{tpu_custom_call.1} parent=1 // pred_fallthru
      _
    // Predicated region
    $region18: #{tpu_custom_call.1} parent=1 // pred_check
      _
    $region19: #{tpu_custom_call.1} parent=1 // pred_check_branch
      %47 = sbr.rel (0) target = $region21
    $region20: #{tpu_custom_call.1} parent=1 // pred_region
      %48 = dma.done [#allocation3], 768
    $region21: #{tpu_custom_call.1} parent=1 // pred_fallthru
      _
    // Predicated region
    $region22: #{tpu_custom_call.1} parent=1 // pred_check
      _
    $region23: #{tpu_custom_call.1} parent=1 // pred_check_branch
      %50 = sbr.rel (0) target = $region25
    $region24: #{tpu_custom_call.1} parent=1 // pred_region
      %51 = dma.done [#allocation6], 1024
    $region25: #{tpu_custom_call.1} parent=1 // pred_fallthru
      _
    %v52 = vld [vmem:[%s0] sm:$0xff]
    %v53 = vld [vmem:[%s1] sm:$0xff]
    %v54 = vlaneseq
    %v55 = vand.u32 %v54, 127
    %56 = vset.pattern.permute.xlu0 0
    %57 = vperm.xlu0 %56, %v52
    %v58 = vpop.permute.xlu0 %57
    %vm59 = vcmp.eq.s32.totalorder %v55, %v58
    %v60 = vsel %vm59, 1, 0
    %v61 = vcvt.s32.f32 %v60
    %62 = vset.pattern.permute.xlu0 0
    %63 = vperm.xlu0 %62, %v53
    %v64 = vpop.permute.xlu0 %63
    %vm65 = vcmp.eq.s32.totalorder %v55, %v64
    %v66 = vsel %vm65, 1, 0
    %v67 = vcvt.s32.f32 %v66
    %v68 = vld [vmem:[#allocation2] sm:$0xff]
    %v69 = vld [vmem:[#allocation2 + $0x8] sm:$0xff]
    %v70 = vld [vmem:[#allocation2 + $0x10] sm:$0xff]
    %v71 = vld [vmem:[#allocation2 + $0x18] sm:$0xff]
    %v72 = vld [vmem:[#allocation2 + $0x20] sm:$0xff]
    %v73 = vld [vmem:[#allocation2 + $0x28] sm:$0xff]
    %vm74 = vcmask 392192
    %v76 = vsel %vm74, %v61, 0
    %78 = vmatprep.subr.mxu0 0.0
    %79 = vmatpush1.msra.mxu0 %v68
    %80 = vmatprep.subr.mxu0 0.0
    %81 = vmatpush1.msra.mxu0 %v69
    %82 = vmatprep.subr.mxu0 0.0
    %83 = vmatpush1.msra.mxu0 %v70
    %84 = vmatprep.subr.mxu0 0.0
    %85 = vmatpush1.msra.mxu0 %v71
    %86 = vmatprep.subr.mxu0 0.0
    %87 = vmatpush1.msra.mxu0 %v72
    %88 = vmatprep.subr.mxu0 0.0
    %89 = vmatpush1.msra.mxu0 %v73
    %90 = vmatprep.subr.mxu0 0.0
    %91 = vmatpush1.msra.mxu0 0.0
    %92 = vmatprep.subr.mxu0 0.0
    %93 = vmatpush1.msra.mxu0 0.0
    %94 = vmatprep.subr.mxu0 0.0
    %95 = vmatpush1.msra.mxu0 0.0
    %96 = vmatprep.subr.mxu0 0.0
    %97 = vmatpush1.msra.mxu0 0.0
    %98 = vmatprep.subr.mxu0 0.0
    %99 = vmatpush1.msra.mxu0 0.0
    %100 = vmatprep.subr.mxu0 0.0
    %101 = vmatpush1.msra.mxu0 0.0
    %102 = vmatprep.subr.mxu0 0.0
    %103 = vmatpush1.msra.mxu0 0.0
    %104 = vmatprep.subr.mxu0 0.0
    %105 = vmatpush1.msra.mxu0 0.0
    %106 = vmatprep.subr.mxu0 0.0
    %107 = vmatpush1.msra.mxu0 0.0
    %108 = vmatprep.subr.mxu0 0.0
    %109 = vmatpush1.msra.mxu0 0.0
    %110 = vmatprep.subr.mxu0 0.0
    %111 = vmatpush1.msra.mxu0 0.0
    %112 = vmatprep.subr.mxu0 0.0
    %113 = vmatpush1.msra.mxu0 0.0
    %114 = vmatprep.subr.mxu0 0.0
    %115 = vmatpush1.msra.mxu0 0.0
    %116 = vmatprep.subr.mxu0 0.0
    %117 = vmatpush1.msra.mxu0 0.0
    %118 = vmatprep.subr.mxu0 0.0
    %119 = vmatpush1.msra.mxu0 0.0
    %120 = vmatprep.subr.mxu0 0.0
    %121 = vmatpush1.msra.mxu0 0.0
    %122 = vmatprep.subr.mxu0 0.0
    %123 = vmatpush1.msra.mxu0 0.0
    %124 = vmatprep.subr.mxu0 0.0
    %125 = vmatpush1.msra.mxu0 0.0
    %126 = vmatprep.subr.mxu0 0.0
    %127 = vmatpush1.msra.mxu0 0.0
    %128 = vmatprep.subr.mxu0 0.0
    %129 = vmatpush1.msra.mxu0 0.0
    %130 = vmatprep.subr.mxu0 0.0
    %131 = vmatpush1.msra.mxu0 0.0
    %132 = vmatprep.subr.mxu0 0.0
    %133 = vmatpush1.msra.mxu0 0.0
    %134 = vmatprep.subr.mxu0 0.0
    %135 = vmatpush1.msra.mxu0 0.0
    %136 = vmatprep.subr.mxu0 0.0
    %137 = vmatpush1.msra.mxu0 0.0
    %138 = vmatprep.subr.mxu0 0.0
    %139 = vmatpush1.msra.mxu0 0.0
    %140 = vmatprep.subr.mxu0 0.0
    %141 = vmatpush1.msra.mxu0 0.0
    %142 = vmatprep.mubr.f32.mxu0 0.0
    %143 = vmatmul.mubr.f32.gmra.mrb[0].mxu0 %v76
    %v144 = vpop.f32.mrb[0].mxu0
    %v145 = vadd.f32 0.0, %v144
    %v146 = vpop.f32.mrb[0].mxu0
    %147 = vdwg.mxu0
    %v148 = vld [vmem:[#allocation5] sm:$0xff]
    %v149 = vld [vmem:[#allocation5 + $0x8] sm:$0xff]
    %v150 = vld [vmem:[#allocation5 + $0x10] sm:$0xff]
    %v151 = vld [vmem:[#allocation5 + $0x18] sm:$0xff]
    %v152 = vld [vmem:[#allocation5 + $0x20] sm:$0xff]
    %v153 = vld [vmem:[#allocation5 + $0x28] sm:$0xff]
    %v154 = vld [vmem:[#allocation5 + $0x30] sm:$0xff]
    %v155 = vld [vmem:[#allocation5 + $0x38] sm:$0xff]
    %vm156 = vcmask 523264
    %v158 = vsel %vm156, %v67, 0
    %160 = vmatprep.subr.mxu0 0.0
    %161 = vmatpush1.msra.mxu0 %v148
    %162 = vmatprep.subr.mxu0 0.0
    %163 = vmatpush1.msra.mxu0 %v149
    %164 = vmatprep.subr.mxu0 0.0
    %165 = vmatpush1.msra.mxu0 %v150
    %166 = vmatprep.subr.mxu0 0.0
    %167 = vmatpush1.msra.mxu0 %v151
    %168 = vmatprep.subr.mxu0 0.0
    %169 = vmatpush1.msra.mxu0 %v152
    %170 = vmatprep.subr.mxu0 0.0
    %171 = vmatpush1.msra.mxu0 %v153
    %172 = vmatprep.subr.mxu0 0.0
    %173 = vmatpush1.msra.mxu0 %v154
    %174 = vmatprep.subr.mxu0 0.0
    %175 = vmatpush1.msra.mxu0 %v155
    %176 = vmatprep.subr.mxu0 0.0
    %177 = vmatpush1.msra.mxu0 0.0
    %178 = vmatprep.subr.mxu0 0.0
    %179 = vmatpush1.msra.mxu0 0.0
    %180 = vmatprep.subr.mxu0 0.0
    %181 = vmatpush1.msra.mxu0 0.0
    %182 = vmatprep.subr.mxu0 0.0
    %183 = vmatpush1.msra.mxu0 0.0
    %184 = vmatprep.subr.mxu0 0.0
    %185 = vmatpush1.msra.mxu0 0.0
    %186 = vmatprep.subr.mxu0 0.0
    %187 = vmatpush1.msra.mxu0 0.0
    %188 = vmatprep.subr.mxu0 0.0
    %189 = vmatpush1.msra.mxu0 0.0
    %190 = vmatprep.subr.mxu0 0.0
    %191 = vmatpush1.msra.mxu0 0.0
    %192 = vmatprep.subr.mxu0 0.0
    %193 = vmatpush1.msra.mxu0 0.0
    %194 = vmatprep.subr.mxu0 0.0
    %195 = vmatpush1.msra.mxu0 0.0
    %196 = vmatprep.subr.mxu0 0.0
    %197 = vmatpush1.msra.mxu0 0.0
    %198 = vmatprep.subr.mxu0 0.0
    %199 = vmatpush1.msra.mxu0 0.0
    %200 = vmatprep.subr.mxu0 0.0
    %201 = vmatpush1.msra.mxu0 0.0
    %202 = vmatprep.subr.mxu0 0.0
    %203 = vmatpush1.msra.mxu0 0.0
    %204 = vmatprep.subr.mxu0 0.0
    %205 = vmatpush1.msra.mxu0 0.0
    %206 = vmatprep.subr.mxu0 0.0
    %207 = vmatpush1.msra.mxu0 0.0
    %208 = vmatprep.subr.mxu0 0.0
    %209 = vmatpush1.msra.mxu0 0.0
    %210 = vmatprep.subr.mxu0 0.0
    %211 = vmatpush1.msra.mxu0 0.0
    %212 = vmatprep.subr.mxu0 0.0
    %213 = vmatpush1.msra.mxu0 0.0
    %214 = vmatprep.subr.mxu0 0.0
    %215 = vmatpush1.msra.mxu0 0.0
    %216 = vmatprep.subr.mxu0 0.0
    %217 = vmatpush1.msra.mxu0 0.0
    %218 = vmatprep.subr.mxu0 0.0
    %219 = vmatpush1.msra.mxu0 0.0
    %220 = vmatprep.subr.mxu0 0.0
    %221 = vmatpush1.msra.mxu0 0.0
    %222 = vmatprep.subr.mxu0 0.0
    %223 = vmatpush1.msra.mxu0 0.0
    %224 = vmatprep.mubr.f32.mxu0 0.0
    %225 = vmatmul.mubr.f32.gmra.mrb[0].mxu0 %v158
    %v226 = vpop.f32.mrb[0].mxu0
    %v227 = vadd.f32 0.0, %v226
    %v228 = vpop.f32.mrb[0].mxu0
    %229 = vdwg.mxu0
    %v230 = vmul.f32 %v145, %v227
    %231 = vadd.xlane.f32.xlu0 %v230
    %v232 = vpop.xlane.xlu0 %231
    %v233 = vxor.u32 %v232, 2147483648
    %v234 = vmul.f32 %v233, 1.442695
    %v235 = vpow.pop %v234
    %v236 = vadd.f32 %v235, 1.0
    %v237 = vrcp.pop %v236
    %v238 = vmul.f32 1.0, %v237
    %vm239 = vcmask 7168
    %240 = vst.msk [vmem:[%s4] sm:$0xff] %vm239, %v238
    %vm241 = vcmask 261120
    %242 = vst.msk [vmem:[#allocation7] sm:$0xff] %vm241, %v145
    %243 = vst.msk [vmem:[#allocation8] sm:$0xff] %vm241, %v227
    %245 = vrot.lane.b32.xlu0 %v145, 96
    %v246 = vpop.permute.xlu0 %245
    %248 = vst.msk [vmem:[%s7] sm:$0xff] %vm239, %v246
    %250 = vrot.lane.b32.xlu0 %v227, 95
    %v251 = vpop.permute.xlu0 %250
    %253 = vst.msk [vmem:[%s8] sm:$0xff] %vm239, %v251
    // Predicated region
    $region26: #{tpu_custom_call.1} parent=1 // pred_check
      _
    $region27: #{tpu_custom_call.1} parent=1 // pred_check_branch
      %255 = sbr.rel (0) target = $region29
    $region28: #{tpu_custom_call.1} parent=1 // pred_region
      _
    $region29: #{tpu_custom_call.1} parent=1 // pred_fallthru
      _
    // Predicated region
    $region30: #{tpu_custom_call.1} parent=1 // pred_check
      _
    $region31: #{tpu_custom_call.1} parent=1 // pred_check_branch
      %257 = sbr.rel (0) target = $region33
    $region32: #{tpu_custom_call.1} parent=1 // pred_region
      %s259 = ssub.s32 128, 128
      %260 = vsyncadd [#allocation4], %s259
      %s262 = sshll.u32 [#allocation7], 4
      %s263 = int_to_ptr.vmem [resolvable:$true] %s262
      %265 = dma.vmem_to_hbm [thread:$0]  %s263, 128, %s5, [#allocation4]
    $region33: #{tpu_custom_call.1} parent=1 // pred_fallthru
      _
    // Predicated region
    $region34: #{tpu_custom_call.1} parent=1 // pred_check
      _
    $region35: #{tpu_custom_call.1} parent=1 // pred_check_branch
      %267 = sbr.rel (0) target = $region37
    $region36: #{tpu_custom_call.1} parent=1 // pred_region
      %s269 = ssub.s32 128, 128
      %270 = vsyncadd [#allocation9], %s269
      %s272 = sshll.u32 [#allocation8], 4
      %s273 = int_to_ptr.vmem [resolvable:$true] %s272
      %275 = dma.vmem_to_hbm [thread:$0]  %s273, 128, %s6, [#allocation9]
    $region37: #{tpu_custom_call.1} parent=1 // pred_fallthru
      _
    // Predicated region
    $region38: #{tpu_custom_call.1} parent=1 // pred_check
      _
    $region39: #{tpu_custom_call.1} parent=1 // pred_check_branch
      %277 = sbr.rel (0) target = $region41
    $region40: #{tpu_custom_call.1} parent=1 // pred_region
      _
    $region41: #{tpu_custom_call.1} parent=1 // pred_fallthru
      _
    // Predicated region
    $region42: #{tpu_custom_call.1} parent=1 // pred_check
      _
    $region43: #{tpu_custom_call.1} parent=1 // pred_check_branch
      %279 = sbr.rel (0) target = $region45
    $region44: #{tpu_custom_call.1} parent=1 // pred_region
      _
    $region45: #{tpu_custom_call.1} parent=1 // pred_fallthru
      _
    // Predicated region
    $region46: #{tpu_custom_call.1} parent=1 // pred_check
      _
    $region47: #{tpu_custom_call.1} parent=1 // pred_check_branch
      %281 = sbr.rel (0) target = $region49
    $region48: #{tpu_custom_call.1} parent=1 // pred_region
      _
    $region49: #{tpu_custom_call.1} parent=1 // pred_fallthru
      _
    // Predicated region
    $region50: #{tpu_custom_call.1} parent=1 // pred_check
      _
    $region51: #{tpu_custom_call.1} parent=1 // pred_check_branch
      %283 = sbr.rel (0) target = $region53
    $region52: #{tpu_custom_call.1} parent=1 // pred_region
      %284 = dma.done [#allocation4], 128
    $region53: #{tpu_custom_call.1} parent=1 // pred_fallthru
      _
    // Predicated region
    $region54: #{tpu_custom_call.1} parent=1 // pred_check
      _
    $region55: #{tpu_custom_call.1} parent=1 // pred_check_branch
      %286 = sbr.rel (0) target = $region57
    $region56: #{tpu_custom_call.1} parent=1 // pred_region
      %287 = dma.done [#allocation9], 128
    $region57: #{tpu_custom_call.1} parent=1 // pred_fallthru
      _
    // Predicated region
    $region58: #{tpu_custom_call.1} parent=1 // pred_check
      _
    $region59: #{tpu_custom_call.1} parent=1 // pred_check_branch
      %289 = sbr.rel (0) target = $region61
    $region60: #{tpu_custom_call.1} parent=1 // pred_region
      _
    $region61: #{tpu_custom_call.1} parent=1 // pred_fallthru
      _
    // Predicated region
    $region62: #{tpu_custom_call.1} parent=1 // pred_check
      _
    $region63: #{tpu_custom_call.1} parent=1 // pred_check_branch
      %291 = sbr.rel (0) target = $region65
    $region64: #{tpu_custom_call.1} parent=1 // pred_region
      _
    $region65: #{tpu_custom_call.1} parent=1 // pred_fallthru
      _
    %292 = vsyncpa [#allocation3], 1
    %293 = vsyncpa [#allocation6], 1
    %294 = vsyncpa [#allocation4], 1
    %295 = vsyncpa [#allocation9], 1

</llo_original>
